<compile_context>
chip_gen: v6e
topology: v6e:2x2x1
jax: 0.10.0
libtpu: 0.0.40
codegen_flags: <defaults>
</compile_context>

<pallas_src>
import functools

import jax
import jax.numpy as jnp
from jax.experimental import pallas as pl
from jax.experimental.pallas import tpu as pltpu

_LANE = 128
_SUBLANE = 8


def _round_up(n, m):
    return ((n + m - 1) // m) * m


def _mlp_kernel(obs_ref, goal_ref,
                w1o_ref, w1g_ref, b1_ref,
                w2_ref, b2_ref,
                w3_ref, b3_ref,
                w4_ref, b4_ref,
                o_ref, *, do_clamp):
    # Layer 1 (glue folded into W1_obs / W1_goal): bf16 MXU, f32 accumulate.
    h = (jnp.dot(obs_ref[...], w1o_ref[...], preferred_element_type=jnp.float32)
         + jnp.dot(goal_ref[...], w1g_ref[...], preferred_element_type=jnp.float32)
         + b1_ref[...])
    h = jnp.maximum(h, 0.0).astype(w2_ref.dtype)

    # Layer 2
    h = jnp.dot(h, w2_ref[...], preferred_element_type=jnp.float32) + b2_ref[...]
    h = jnp.maximum(h, 0.0).astype(w3_ref.dtype)

    # Layer 3
    h = jnp.dot(h, w3_ref[...], preferred_element_type=jnp.float32) + b3_ref[...]
    h = jnp.maximum(h, 0.0).astype(w4_ref.dtype)

    # Layer 4: regression head, padded to 128 lanes (lane-dense store).
    out = jnp.dot(h, w4_ref[...], preferred_element_type=jnp.float32) + b4_ref[...]
    if do_clamp:
        # eval=True and no soft_clipping  ->  torch.clamp(pred, 0.0, 1.0)
        out = jnp.clip(out, 0.0, 1.0)
    o_ref[...] = out


def init_params(key, input_dim, hidden_dim):
    """Deterministic synthetic parameter init (shapes match the nn.Sequential)."""
    ks = jax.random.split(key, 8)
    scale = 0.1
    return {
        "w1": jax.random.normal(ks[0], (input_dim, hidden_dim), jnp.float32) * scale,
        "b1": jax.random.normal(ks[1], (1, hidden_dim), jnp.float32) * scale,
        "w2": jax.random.normal(ks[2], (hidden_dim, hidden_dim), jnp.float32) * scale,
        "b2": jax.random.normal(ks[3], (1, hidden_dim), jnp.float32) * scale,
        "w3": jax.random.normal(ks[4], (hidden_dim, hidden_dim), jnp.float32) * scale,
        "b3": jax.random.normal(ks[5], (1, hidden_dim), jnp.float32) * scale,
        "w4": jax.random.normal(ks[6], (hidden_dim, 1), jnp.float32) * scale,
        "b4": jax.random.normal(ks[7], (1, 1), jnp.float32) * scale,
    }


def _build_operands(obs, goal, params, *, t_relative, tile_b):
    """Fold the concat glue into layer-1 weights and zero-pad to lane-aligned shapes."""
    obs = obs.astype(jnp.float32)
    goal = goal.astype(jnp.float32)
    B, dimu = obs.shape
    H = params["w1"].shape[1]

    w1 = params["w1"].astype(jnp.float32)
    if t_relative:
        # input = [obs[:, :-3], goal[:, :-3], goal[:, -3:] - obs[:, -3:]]
        # => input @ W1 == obs @ W1_obs + goal @ W1_goal
        d = dimu - 3
        w1_obs = jnp.concatenate([w1[:d], -w1[2 * d:2 * d + 3]], axis=0)
        w1_goal = jnp.concatenate([w1[d:2 * d], w1[2 * d:2 * d + 3]], axis=0)
    else:
        w1_obs = w1[:dimu]
        w1_goal = w1[dimu:]

    d_pad = _round_up(dimu, _LANE)
    h_pad = _round_up(H, _LANE)
    out_pad = _LANE

    tile_b_eff = _round_up(min(tile_b, _round_up(B, _SUBLANE)), _SUBLANE)
    b_pad = _round_up(B, tile_b_eff)

    def pad2(a, rows, cols):
        return jnp.pad(a, ((0, rows - a.shape[0]), (0, cols - a.shape[1])))

    bf16 = jnp.bfloat16
    f32 = jnp.float32
    ops = dict(
        obs=pad2(obs, b_pad, d_pad).astype(bf16),
        goal=pad2(goal, b_pad, d_pad).astype(bf16),
        w1_obs=pad2(w1_obs, d_pad, h_pad).astype(bf16),
        w1_goal=pad2(w1_goal, d_pad, h_pad).astype(bf16),
        b1=pad2(params["b1"].astype(f32), 1, h_pad),
        w2=pad2(params["w2"].astype(f32), h_pad, h_pad).astype(bf16),
        b2=pad2(params["b2"].astype(f32), 1, h_pad),
        w3=pad2(params["w3"].astype(f32), h_pad, h_pad).astype(bf16),
        b3=pad2(params["b3"].astype(f32), 1, h_pad),
        w4=pad2(params["w4"].astype(f32), h_pad, out_pad).astype(bf16),
        b4=pad2(params["b4"].astype(f32), 1, out_pad),
    )
    dims = dict(B=B, b_pad=b_pad, tile_b=tile_b_eff,
                d_pad=d_pad, h_pad=h_pad, out_pad=out_pad)
    return ops, dims


def feasibility_forward(obs, goal, params, *, t_relative=True, eval_mode=True,
                        tile_b=512):
    """Mirror of FeasibilityPredictor.forward for bin_succ=False."""
    ops, dims = _build_operands(obs, goal, params,
                                t_relative=t_relative, tile_b=tile_b)
    tb = dims["tile_b"]
    dp, hp, op_ = dims["d_pad"], dims["h_pad"], dims["out_pad"]
    grid = (dims["b_pad"] // tb,)

    def batch_spec(cols):
        return pl.BlockSpec((tb, cols), lambda i: (i, 0))

    def const_spec(rows, cols):
        # Constant index_map: weights/biases are DMA'd once and stay resident.
        return pl.BlockSpec((rows, cols), lambda i: (0, 0))

    in_specs = [
        batch_spec(dp), batch_spec(dp),                              # obs, goal
        const_spec(dp, hp), const_spec(dp, hp), const_spec(1, hp),   # w1o, w1g, b1
        const_spec(hp, hp), const_spec(1, hp),                       # w2, b2
        const_spec(hp, hp), const_spec(1, hp),                       # w3, b3
        const_spec(hp, op_), const_spec(1, op_),                     # w4, b4
    ]
    out_specs = pl.BlockSpec((tb, op_), lambda i: (i, 0))

    out = pl.pallas_call(
        functools.partial(_mlp_kernel, do_clamp=eval_mode),
        out_shape=jax.ShapeDtypeStruct((dims["b_pad"], op_), jnp.float32),
        grid_spec=pltpu.PrefetchScalarGridSpec(
            num_scalar_prefetch=0,
            grid=grid,
            in_specs=in_specs,
            out_specs=out_specs,
        ),
        compiler_params=pltpu.CompilerParams(
            dimension_semantics=("parallel",),        # shards batch over v7x's 2 TCs
            vmem_limit_bytes=32 * 1024 * 1024,        # fits v7x's 64 MiB VMEM
        ),
    )(ops["obs"], ops["goal"], ops["w1_obs"], ops["w1_goal"], ops["b1"],
      ops["w2"], ops["b2"], ops["w3"], ops["b3"], ops["w4"], ops["b4"])

    # pred = self.network(input)[:, 0]  (lane 0 of the lane-dense head)
    return out[:dims["B"], 0]
    # TODO(synk): bin_succ=True branch (2-way head + softmax) and soft_clipping
    # are not exercised by this synthetic config.


def reference_forward(obs, goal, params, *, t_relative=True, eval_mode=True,
                      tile_b=512):
    """Pure-JAX reference with the identical bf16-MXU / f32-accumulate math."""
    ops, dims = _build_operands(obs, goal, params,
                                t_relative=t_relative, tile_b=tile_b)
    f32 = jnp.float32
    h = (jnp.dot(ops["obs"], ops["w1_obs"], preferred_element_type=f32)
         + jnp.dot(ops["goal"], ops["w1_goal"], preferred_element_type=f32)
         + ops["b1"])
    h = jnp.maximum(h, 0.0).astype(jnp.bfloat16)
    h = jnp.dot(h, ops["w2"], preferred_element_type=f32) + ops["b2"]
    h = jnp.maximum(h, 0.0).astype(jnp.bfloat16)
    h = jnp.dot(h, ops["w3"], preferred_element_type=f32) + ops["b3"]
    h = jnp.maximum(h, 0.0).astype(jnp.bfloat16)
    out = jnp.dot(h, ops["w4"], preferred_element_type=f32) + ops["b4"]
    pred = out[:dims["B"], 0]
    if eval_mode:
        pred = jnp.clip(pred, 0.0, 1.0)
    return pred


if __name__ == "__main__":
    # Small shapes: batch=8, dimu=16 (obs/goal are (8, 16)),
    # t_relative=True -> input_dim = 2*16 - 3 = 29, hidden_dim = 32.
    batch, dimu, hidden_dim = 8, 16, 32
    input_dim = 2 * dimu - 3

    key = jax.random.PRNGKey(0)
    k_obs, k_goal, k_params = jax.random.split(key, 3)
    obs = jax.random.normal(k_obs, (batch, dimu), jnp.float32)
    goal = jax.random.normal(k_goal, (batch, dimu), jnp.float32)
    params = init_params(k_params, input_dim, hidden_dim)

    pred = feasibility_forward(obs, goal, params, t_relative=True, eval_mode=True)
    pred = jax.block_until_ready(pred)

    ref = reference_forward(obs, goal, params, t_relative=True, eval_mode=True)
    assert pred.shape == (batch,)
    assert jnp.allclose(pred, ref, atol=1e-3, rtol=1e-3), (pred, ref)

    print("KERNEL_OK")
</pallas_src>

<mosaic_0001>
module attributes {stable_mosaic.version = 11 : i64} {
  func.func @_mlp_kernel(%arg0: i32, %arg1: memref<8x128xbf16, #tpu.memory_space<vmem>>, %arg2: memref<8x128xbf16, #tpu.memory_space<vmem>>, %arg3: memref<128x128xbf16, #tpu.memory_space<vmem>>, %arg4: memref<128x128xbf16, #tpu.memory_space<vmem>>, %arg5: memref<1x128xf32, #tpu.memory_space<vmem>>, %arg6: memref<128x128xbf16, #tpu.memory_space<vmem>>, %arg7: memref<1x128xf32, #tpu.memory_space<vmem>>, %arg8: memref<128x128xbf16, #tpu.memory_space<vmem>>, %arg9: memref<1x128xf32, #tpu.memory_space<vmem>>, %arg10: memref<128x128xbf16, #tpu.memory_space<vmem>>, %arg11: memref<1x128xf32, #tpu.memory_space<vmem>>, %arg12: memref<8x128xf32, #tpu.memory_space<vmem>>) attributes {dimension_semantics = [#tpu.dimension_semantics<parallel>], iteration_bounds = array<i64: 1>, scalar_prefetch = 0 : i64, scratch_operands = 0 : i64, tpu.core_type = #tpu.core_type<tc>, window_params = [{transform_indices = @transform_0, window_bounds = array<i64: 8, 128>}, {transform_indices = @transform_1, window_bounds = array<i64: 8, 128>}, {pipeline_mode = #tpu.pipeline_mode<synchronous>, transform_indices = @transform_2, window_bounds = array<i64: 128, 128>}, {pipeline_mode = #tpu.pipeline_mode<synchronous>, transform_indices = @transform_3, window_bounds = array<i64: 128, 128>}, {pipeline_mode = #tpu.pipeline_mode<synchronous>, transform_indices = @transform_4, window_bounds = array<i64: 1, 128>}, {pipeline_mode = #tpu.pipeline_mode<synchronous>, transform_indices = @transform_5, window_bounds = array<i64: 128, 128>}, {pipeline_mode = #tpu.pipeline_mode<synchronous>, transform_indices = @transform_6, window_bounds = array<i64: 1, 128>}, {pipeline_mode = #tpu.pipeline_mode<synchronous>, transform_indices = @transform_7, window_bounds = array<i64: 128, 128>}, {pipeline_mode = #tpu.pipeline_mode<synchronous>, transform_indices = @transform_8, window_bounds = array<i64: 1, 128>}, {pipeline_mode = #tpu.pipeline_mode<synchronous>, transform_indices = @transform_9, window_bounds = array<i64: 128, 128>}, {pipeline_mode = #tpu.pipeline_mode<synchronous>, transform_indices = @transform_10, window_bounds = array<i64: 1, 128>}, {transform_indices = @transform_11, window_bounds = array<i64: 8, 128>}]} {
    %c0 = arith.constant 0 : index
    %c0_0 = arith.constant 0 : index
    %0 = vector.load %arg1[%c0, %c0_0] : memref<8x128xbf16, #tpu.memory_space<vmem>>, vector<8x128xbf16>
    %c0_1 = arith.constant 0 : index
    %c0_2 = arith.constant 0 : index
    %1 = vector.load %arg3[%c0_1, %c0_2] : memref<128x128xbf16, #tpu.memory_space<vmem>>, vector<128x128xbf16>
    %cst = arith.constant dense<0.000000e+00> : vector<8x128xf32>
    %2 = tpu.matmul %0, %1, %cst {dimension_numbers = #tpu.dot_dimension_numbers<[1], [0], [0], [1], [0, 0, 1, 1], [], []>} : vector<8x128xbf16>, vector<128x128xbf16>, vector<8x128xf32> -> vector<8x128xf32>
    %c0_3 = arith.constant 0 : index
    %c0_4 = arith.constant 0 : index
    %3 = vector.load %arg2[%c0_3, %c0_4] : memref<8x128xbf16, #tpu.memory_space<vmem>>, vector<8x128xbf16>
    %c0_5 = arith.constant 0 : index
    %c0_6 = arith.constant 0 : index
    %4 = vector.load %arg4[%c0_5, %c0_6] : memref<128x128xbf16, #tpu.memory_space<vmem>>, vector<128x128xbf16>
    %cst_7 = arith.constant dense<0.000000e+00> : vector<8x128xf32>
    %5 = tpu.matmul %3, %4, %cst_7 {dimension_numbers = #tpu.dot_dimension_numbers<[1], [0], [0], [1], [0, 0, 1, 1], [], []>} : vector<8x128xbf16>, vector<128x128xbf16>, vector<8x128xf32> -> vector<8x128xf32>
    %6 = arith.addf %2, %5 : vector<8x128xf32>
    %c0_8 = arith.constant 0 : index
    %c0_9 = arith.constant 0 : index
    %7 = vector.load %arg5[%c0_8, %c0_9] : memref<1x128xf32, #tpu.memory_space<vmem>>, vector<1x128xf32>
    %8 = vector.broadcast %7 : vector<1x128xf32> to vector<8x128xf32>
    %9 = arith.addf %6, %8 : vector<8x128xf32>
    %cst_10 = arith.constant 0.000000e+00 : f32
    %10 = vector.broadcast %cst_10 : f32 to vector<8x128xf32>
    %11 = arith.maximumf %9, %10 : vector<8x128xf32>
    %12 = arith.truncf %11 : vector<8x128xf32> to vector<8x128xbf16>
    %c0_11 = arith.constant 0 : index
    %c0_12 = arith.constant 0 : index
    %13 = vector.load %arg6[%c0_11, %c0_12] : memref<128x128xbf16, #tpu.memory_space<vmem>>, vector<128x128xbf16>
    %cst_13 = arith.constant dense<0.000000e+00> : vector<8x128xf32>
    %14 = tpu.matmul %12, %13, %cst_13 {dimension_numbers = #tpu.dot_dimension_numbers<[1], [0], [0], [1], [0, 0, 1, 1], [], []>} : vector<8x128xbf16>, vector<128x128xbf16>, vector<8x128xf32> -> vector<8x128xf32>
    %c0_14 = arith.constant 0 : index
    %c0_15 = arith.constant 0 : index
    %15 = vector.load %arg7[%c0_14, %c0_15] : memref<1x128xf32, #tpu.memory_space<vmem>>, vector<1x128xf32>
    %16 = vector.broadcast %15 : vector<1x128xf32> to vector<8x128xf32>
    %17 = arith.addf %14, %16 : vector<8x128xf32>
    %cst_16 = arith.constant 0.000000e+00 : f32
    %18 = vector.broadcast %cst_16 : f32 to vector<8x128xf32>
    %19 = arith.maximumf %17, %18 : vector<8x128xf32>
    %20 = arith.truncf %19 : vector<8x128xf32> to vector<8x128xbf16>
    %c0_17 = arith.constant 0 : index
    %c0_18 = arith.constant 0 : index
    %21 = vector.load %arg8[%c0_17, %c0_18] : memref<128x128xbf16, #tpu.memory_space<vmem>>, vector<128x128xbf16>
    %cst_19 = arith.constant dense<0.000000e+00> : vector<8x128xf32>
    %22 = tpu.matmul %20, %21, %cst_19 {dimension_numbers = #tpu.dot_dimension_numbers<[1], [0], [0], [1], [0, 0, 1, 1], [], []>} : vector<8x128xbf16>, vector<128x128xbf16>, vector<8x128xf32> -> vector<8x128xf32>
    %c0_20 = arith.constant 0 : index
    %c0_21 = arith.constant 0 : index
    %23 = vector.load %arg9[%c0_20, %c0_21] : memref<1x128xf32, #tpu.memory_space<vmem>>, vector<1x128xf32>
    %24 = vector.broadcast %23 : vector<1x128xf32> to vector<8x128xf32>
    %25 = arith.addf %22, %24 : vector<8x128xf32>
    %cst_22 = arith.constant 0.000000e+00 : f32
    %26 = vector.broadcast %cst_22 : f32 to vector<8x128xf32>
    %27 = arith.maximumf %25, %26 : vector<8x128xf32>
    %28 = arith.truncf %27 : vector<8x128xf32> to vector<8x128xbf16>
    %c0_23 = arith.constant 0 : index
    %c0_24 = arith.constant 0 : index
    %29 = vector.load %arg10[%c0_23, %c0_24] : memref<128x128xbf16, #tpu.memory_space<vmem>>, vector<128x128xbf16>
    %cst_25 = arith.constant dense<0.000000e+00> : vector<8x128xf32>
    %30 = tpu.matmul %28, %29, %cst_25 {dimension_numbers = #tpu.dot_dimension_numbers<[1], [0], [0], [1], [0, 0, 1, 1], [], []>} : vector<8x128xbf16>, vector<128x128xbf16>, vector<8x128xf32> -> vector<8x128xf32>
    %c0_26 = arith.constant 0 : index
    %c0_27 = arith.constant 0 : index
    %31 = vector.load %arg11[%c0_26, %c0_27] : memref<1x128xf32, #tpu.memory_space<vmem>>, vector<1x128xf32>
    %32 = vector.broadcast %31 : vector<1x128xf32> to vector<8x128xf32>
    %33 = arith.addf %30, %32 : vector<8x128xf32>
    %cst_28 = arith.constant 0.000000e+00 : f32
    %cst_29 = arith.constant 1.000000e+00 : f32
    %34 = vector.broadcast %cst_28 : f32 to vector<8x128xf32>
    %35 = arith.maximumf %34, %33 : vector<8x128xf32>
    %36 = vector.broadcast %cst_29 : f32 to vector<8x128xf32>
    %37 = arith.minimumf %36, %35 : vector<8x128xf32>
    %c0_30 = arith.constant 0 : index
    %c0_31 = arith.constant 0 : index
    %38 = vector.load %arg12[%c0_30, %c0_31] : memref<8x128xf32, #tpu.memory_space<vmem>>, vector<8x128xf32>
    tpu.vector_store %arg12[%c0_30, %c0_31], %37 {strides = array<i32>} : memref<8x128xf32, #tpu.memory_space<vmem>>, vector<8x128xf32>,
    return
  }
  func.func @transform_0(%arg0: i32) -> (i32, i32) {
    %c0_i32 = arith.constant 0 : i32
    %c0_i32_0 = arith.constant 0 : i32
    return %arg0, %c0_i32 : i32, i32
  }
  func.func @transform_1(%arg0: i32) -> (i32, i32) {
    %c0_i32 = arith.constant 0 : i32
    %c0_i32_0 = arith.constant 0 : i32
    return %arg0, %c0_i32 : i32, i32
  }
  func.func @transform_2(%arg0: i32) -> (i32, i32) {
    %c0_i32 = arith.constant 0 : i32
    %c0_i32_0 = arith.constant 0 : i32
    %c0_i32_1 = arith.constant 0 : i32
    return %c0_i32, %c0_i32_0 : i32, i32
  }
  func.func @transform_3(%arg0: i32) -> (i32, i32) {
    %c0_i32 = arith.constant 0 : i32
    %c0_i32_0 = arith.constant 0 : i32
    %c0_i32_1 = arith.constant 0 : i32
    return %c0_i32, %c0_i32_0 : i32, i32
  }
  func.func @transform_4(%arg0: i32) -> (i32, i32) {
    %c0_i32 = arith.constant 0 : i32
    %c0_i32_0 = arith.constant 0 : i32
    %c0_i32_1 = arith.constant 0 : i32
    return %c0_i32, %c0_i32_0 : i32, i32
  }
  func.func @transform_5(%arg0: i32) -> (i32, i32) {
    %c0_i32 = arith.constant 0 : i32
    %c0_i32_0 = arith.constant 0 : i32
    %c0_i32_1 = arith.constant 0 : i32
    return %c0_i32, %c0_i32_0 : i32, i32
  }
  func.func @transform_6(%arg0: i32) -> (i32, i32) {
    %c0_i32 = arith.constant 0 : i32
    %c0_i32_0 = arith.constant 0 : i32
    %c0_i32_1 = arith.constant 0 : i32
    return %c0_i32, %c0_i32_0 : i32, i32
  }
  func.func @transform_7(%arg0: i32) -> (i32, i32) {
    %c0_i32 = arith.constant 0 : i32
    %c0_i32_0 = arith.constant 0 : i32
    %c0_i32_1 = arith.constant 0 : i32
    return %c0_i32, %c0_i32_0 : i32, i32
  }
  func.func @transform_8(%arg0: i32) -> (i32, i32) {
    %c0_i32 = arith.constant 0 : i32
    %c0_i32_0 = arith.constant 0 : i32
    %c0_i32_1 = arith.constant 0 : i32
    return %c0_i32, %c0_i32_0 : i32, i32
  }
  func.func @transform_9(%arg0: i32) -> (i32, i32) {
    %c0_i32 = arith.constant 0 : i32
    %c0_i32_0 = arith.constant 0 : i32
    %c0_i32_1 = arith.constant 0 : i32
    return %c0_i32, %c0_i32_0 : i32, i32
  }
  func.func @transform_10(%arg0: i32) -> (i32, i32) {
    %c0_i32 = arith.constant 0 : i32
    %c0_i32_0 = arith.constant 0 : i32
    %c0_i32_1 = arith.constant 0 : i32
    return %c0_i32, %c0_i32_0 : i32, i32
  }
  func.func @transform_11(%arg0: i32) -> (i32, i32) {
    %c0_i32 = arith.constant 0 : i32
    %c0_i32_0 = arith.constant 0 : i32
    return %arg0, %c0_i32 : i32, i32
  }
}

</mosaic_0001>

<llo_original>
// kernel: tpu_custom_call.1
$region0: #{tpu_custom_call.1}
  #allocation0 [shape = 'u32[]', space=smem, size = 0x4, offset = 0x4, fixed_abs, tag = 'smem constant byte address 0x4 - core index']
  #allocation1 [shape = 'u32[144,128]{1,0:T(1,128)}', space=vmem, size = 0x12000, scoped, tag = 'internal scratch']
  %s0 = inlined_call_operand.hbm [shape: bf16[8,128], index: 0, kind: input, shape index: {}]
  %s1 = inlined_call_operand.hbm [shape: bf16[8,128], index: 1, kind: input, shape index: {}]
  %s2 = inlined_call_operand.hbm [shape: bf16[128,128], index: 2, kind: input, shape index: {}]
  %s3 = inlined_call_operand.hbm [shape: bf16[128,128], index: 3, kind: input, shape index: {}]
  %s4 = inlined_call_operand.vmem [shape: f32[1,128], index: 4, kind: input, shape index: {}]
  %s5 = inlined_call_operand.hbm [shape: bf16[128,128], index: 5, kind: input, shape index: {}]
  %s6 = inlined_call_operand.vmem [shape: f32[1,128], index: 6, kind: input, shape index: {}]
  %s7 = inlined_call_operand.hbm [shape: bf16[128,128], index: 7, kind: input, shape index: {}]
  %s8 = inlined_call_operand.vmem [shape: f32[1,128], index: 8, kind: input, shape index: {}]
  %s9 = inlined_call_operand.hbm [shape: bf16[128,128], index: 9, kind: input, shape index: {}]
  %s10 = inlined_call_operand.vmem [shape: f32[1,128], index: 10, kind: input, shape index: {}]
  %s11 = inlined_call_operand.hbm [shape: f32[8,128], index: 11, kind: output, shape index: {}]
  %s12 = sld [smem:[#allocation0]]
  $region82: #{tpu_custom_call.1} parent=0
    _
  %s14 = ssub.s32 1, %s12
  %s15 = scalar_select 0, %s14, %s12
  $region1: #{tpu_custom_call.1} parent=0
    #allocation2 [shape = 'u8[2048]{0}', space=vmem, size = 0x800, scoped, tag = 'input window, operand 0, single buffered']
    #allocation3 [shape = 's32[1]{0}', space=sflag, size = 0x4, scoped, tag = 'scoped memory for tpu_custom_call.1']
    #allocation4 [shape = 's32[1]{0}', space=sflag, size = 0x4, scoped, tag = 'scoped memory for tpu_custom_call.1']
    #allocation5 [shape = 'u8[2048]{0}', space=vmem, size = 0x800, scoped, tag = 'input window, operand 1, single buffered']
    #allocation6 [shape = 's32[1]{0}', space=sflag, size = 0x4, scoped, tag = 'scoped memory for tpu_custom_call.1']
    #allocation7 [shape = 'u8[32768]{0}', space=vmem, size = 0x8000, scoped, tag = 'input window, operand 2, single buffered']
    #allocation8 [shape = 'u8[32768]{0}', space=vmem, size = 0x8000, scoped, tag = 'input window, operand 3, single buffered']
    #allocation9 [shape = 's32[1]{0}', space=sflag, size = 0x4, scoped, tag = 'scoped memory for tpu_custom_call.1']
    #allocation10 [shape = 'u8[32768]{0}', space=vmem, size = 0x8000, scoped, tag = 'input window, operand 5, single buffered']
    #allocation11 [shape = 'u8[32768]{0}', space=vmem, size = 0x8000, scoped, tag = 'input window, operand 7, single buffered']
    #allocation12 [shape = 's32[1]{0}', space=sflag, size = 0x4, scoped, tag = 'scoped memory for tpu_custom_call.1']
    #allocation13 [shape = 'u8[32768]{0}', space=vmem, size = 0x8000, scoped, tag = 'input window, operand 9, single buffered']
    #allocation14 [shape = 'u8[4096]{0}', space=vmem, size = 0x1000, scoped, tag = 'output window, operand 0, single buffered']
    %16 = vsyncpa [#allocation3], 0
    %17 = vsyncpa [#allocation6], 0
    %18 = vsyncpa [#allocation9], 0
    %19 = vsyncpa [#allocation12], 0
    %20 = vsyncpa [#allocation4], 0
    // Predicated region
    $region2: #{tpu_custom_call.1} parent=1 // pred_check
      _
    $region3: #{tpu_custom_call.1} parent=1 // pred_check_branch
      %22 = sbr.rel (0) target = $region5
    $region4: #{tpu_custom_call.1} parent=1 // pred_region
      %s24 = ssub.s32 64, 64
      %25 = vsyncadd [#allocation3], %s24
      %s27 = sshll.u32 [#allocation2], 4
      %s28 = int_to_ptr.vmem [resolvable:$true] %s27
      %30 = dma.hbm_to_vmem [thread:$0]  %s0, 64, %s28, [#allocation3]
    $region5: #{tpu_custom_call.1} parent=1 // pred_fallthru
      _
    // Predicated region
    $region6: #{tpu_custom_call.1} parent=1 // pred_check
      _
    $region7: #{tpu_custom_call.1} parent=1 // pred_check_branch
      %32 = sbr.rel (0) target = $region9
    $region8: #{tpu_custom_call.1} parent=1 // pred_region
      %s34 = ssub.s32 64, 64
      %35 = vsyncadd [#allocation6], %s34
      %s37 = sshll.u32 [#allocation5], 4
      %s38 = int_to_ptr.vmem [resolvable:$true] %s37
      %40 = dma.hbm_to_vmem [thread:$0]  %s1, 64, %s38, [#allocation6]
    $region9: #{tpu_custom_call.1} parent=1 // pred_fallthru
      _
    // Predicated region
    $region10: #{tpu_custom_call.1} parent=1 // pred_check
      _
    $region11: #{tpu_custom_call.1} parent=1 // pred_check_branch
      %42 = sbr.rel (0) target = $region13
    $region12: #{tpu_custom_call.1} parent=1 // pred_region
      %s44 = ssub.s32 1024, 1024
      %45 = vsyncadd [#allocation6], %s44
      %s46 = sshll.u32 [#allocation7], 4
      %s47 = int_to_ptr.vmem [resolvable:$true] %s46
      %52 = dma.hbm_to_vmem [thread:$0]  %s2, 1024, %s47, [#allocation6], 64, 64, 4
    $region13: #{tpu_custom_call.1} parent=1 // pred_fallthru
      _
    // Predicated region
    $region14: #{tpu_custom_call.1} parent=1 // pred_check
      _
    $region15: #{tpu_custom_call.1} parent=1 // pred_check_branch
      %54 = sbr.rel (0) target = $region17
    $region16: #{tpu_custom_call.1} parent=1 // pred_region
      %s56 = ssub.s32 1024, 1024
      %57 = vsyncadd [#allocation9], %s56
      %s58 = sshll.u32 [#allocation8], 4
      %s59 = int_to_ptr.vmem [resolvable:$true] %s58
      %64 = dma.hbm_to_vmem [thread:$0]  %s3, 1024, %s59, [#allocation9], 64, 64, 4
    $region17: #{tpu_custom_call.1} parent=1 // pred_fallthru
      _
    // Predicated region
    $region18: #{tpu_custom_call.1} parent=1 // pred_check
      _
    $region19: #{tpu_custom_call.1} parent=1 // pred_check_branch
      %66 = sbr.rel (0) target = $region21
    $region20: #{tpu_custom_call.1} parent=1 // pred_region
      _
    $region21: #{tpu_custom_call.1} parent=1 // pred_fallthru
      _
    // Predicated region
    $region22: #{tpu_custom_call.1} parent=1 // pred_check
      _
    $region23: #{tpu_custom_call.1} parent=1 // pred_check_branch
      %68 = sbr.rel (0) target = $region25
    $region24: #{tpu_custom_call.1} parent=1 // pred_region
      %s70 = ssub.s32 1024, 1024
      %71 = vsyncadd [#allocation9], %s70
      %s72 = sshll.u32 [#allocation10], 4
      %s73 = int_to_ptr.vmem [resolvable:$true] %s72
      %78 = dma.hbm_to_vmem [thread:$0]  %s5, 1024, %s73, [#allocation9], 64, 64, 4
    $region25: #{tpu_custom_call.1} parent=1 // pred_fallthru
      _
    // Predicated region
    $region26: #{tpu_custom_call.1} parent=1 // pred_check
      _
    $region27: #{tpu_custom_call.1} parent=1 // pred_check_branch
      %80 = sbr.rel (0) target = $region29
    $region28: #{tpu_custom_call.1} parent=1 // pred_region
      _
    $region29: #{tpu_custom_call.1} parent=1 // pred_fallthru
      _
    // Predicated region
    $region30: #{tpu_custom_call.1} parent=1 // pred_check
      _
    $region31: #{tpu_custom_call.1} parent=1 // pred_check_branch
      %82 = sbr.rel (0) target = $region33
    $region32: #{tpu_custom_call.1} parent=1 // pred_region
      %s84 = ssub.s32 1024, 1024
      %85 = vsyncadd [#allocation12], %s84
      %s86 = sshll.u32 [#allocation11], 4
      %s87 = int_to_ptr.vmem [resolvable:$true] %s86
      %92 = dma.hbm_to_vmem [thread:$0]  %s7, 1024, %s87, [#allocation12], 64, 64, 4
    $region33: #{tpu_custom_call.1} parent=1 // pred_fallthru
      _
    // Predicated region
    $region34: #{tpu_custom_call.1} parent=1 // pred_check
      _
    $region35: #{tpu_custom_call.1} parent=1 // pred_check_branch
      %94 = sbr.rel (0) target = $region37
    $region36: #{tpu_custom_call.1} parent=1 // pred_region
      _
    $region37: #{tpu_custom_call.1} parent=1 // pred_fallthru
      _
    // Predicated region
    $region38: #{tpu_custom_call.1} parent=1 // pred_check
      _
    $region39: #{tpu_custom_call.1} parent=1 // pred_check_branch
      %96 = sbr.rel (0) target = $region41
    $region40: #{tpu_custom_call.1} parent=1 // pred_region
      %s98 = ssub.s32 1024, 1024
      %99 = vsyncadd [#allocation12], %s98
      %s100 = sshll.u32 [#allocation13], 4
      %s101 = int_to_ptr.vmem [resolvable:$true] %s100
      %106 = dma.hbm_to_vmem [thread:$0]  %s9, 1024, %s101, [#allocation12], 64, 64, 4
    $region41: #{tpu_custom_call.1} parent=1 // pred_fallthru
      _
    // Predicated region
    $region42: #{tpu_custom_call.1} parent=1 // pred_check
      _
    $region43: #{tpu_custom_call.1} parent=1 // pred_check_branch
      %108 = sbr.rel (0) target = $region45
    $region44: #{tpu_custom_call.1} parent=1 // pred_region
      _
    $region45: #{tpu_custom_call.1} parent=1 // pred_fallthru
      _
    // Predicated region
    $region46: #{tpu_custom_call.1} parent=1 // pred_check
      _
    $region47: #{tpu_custom_call.1} parent=1 // pred_check_branch
      %110 = sbr.rel (0) target = $region49
    $region48: #{tpu_custom_call.1} parent=1 // pred_region
      %111 = dma.done [#allocation3], 64
    $region49: #{tpu_custom_call.1} parent=1 // pred_fallthru
      _
    // Predicated region
    $region50: #{tpu_custom_call.1} parent=1 // pred_check
      _
    $region51: #{tpu_custom_call.1} parent=1 // pred_check_branch
      %113 = sbr.rel (0) target = $region53
    $region52: #{tpu_custom_call.1} parent=1 // pred_region
      %114 = dma.done [#allocation6], 64
    $region53: #{tpu_custom_call.1} parent=1 // pred_fallthru
      _
    // Predicated region
    $region54: #{tpu_custom_call.1} parent=1 // pred_check
      _
    $region55: #{tpu_custom_call.1} parent=1 // pred_check_branch
      %116 = sbr.rel (0) target = $region57
    $region56: #{tpu_custom_call.1} parent=1 // pred_region
      %117 = dma.done [#allocation6], 1024
    $region57: #{tpu_custom_call.1} parent=1 // pred_fallthru
      _
    // Predicated region
    $region58: #{tpu_custom_call.1} parent=1 // pred_check
      _
    $region59: #{tpu_custom_call.1} parent=1 // pred_check_branch
      %119 = sbr.rel (0) target = $region61
    $region60: #{tpu_custom_call.1} parent=1 // pred_region
      %120 = dma.done [#allocation9], 1024
    $region61: #{tpu_custom_call.1} parent=1 // pred_fallthru
      _
    // Predicated region
    $region62: #{tpu_custom_call.1} parent=1 // pred_check
      _
    $region63: #{tpu_custom_call.1} parent=1 // pred_check_branch
      %122 = sbr.rel (0) target = $region65
    $region64: #{tpu_custom_call.1} parent=1 // pred_region
      %123 = dma.done [#allocation9], 1024
    $region65: #{tpu_custom_call.1} parent=1 // pred_fallthru
      _
    // Predicated region
    $region66: #{tpu_custom_call.1} parent=1 // pred_check
      _
    $region67: #{tpu_custom_call.1} parent=1 // pred_check_branch
      %125 = sbr.rel (0) target = $region69
    $region68: #{tpu_custom_call.1} parent=1 // pred_region
      %126 = dma.done [#allocation12], 1024
    $region69: #{tpu_custom_call.1} parent=1 // pred_fallthru
      _
    // Predicated region
    $region70: #{tpu_custom_call.1} parent=1 // pred_check
      _
    $region71: #{tpu_custom_call.1} parent=1 // pred_check_branch
      %128 = sbr.rel (0) target = $region73
    $region72: #{tpu_custom_call.1} parent=1 // pred_region
      %129 = dma.done [#allocation12], 1024
    $region73: #{tpu_custom_call.1} parent=1 // pred_fallthru
      _
    %v131 = vld [vmem:[#allocation2] sm:$0xf]
    %v132 = vld [vmem:[#allocation7] sm:$0xf]
    %v133 = vld [vmem:[#allocation7 + $0x4] sm:$0xf]
    %v134 = vld [vmem:[#allocation7 + $0x8] sm:$0xf]
    %v135 = vld [vmem:[#allocation7 + $0xc] sm:$0xf]
    %v136 = vld [vmem:[#allocation7 + $0x10] sm:$0xf]
    %v137 = vld [vmem:[#allocation7 + $0x14] sm:$0xf]
    %v138 = vld [vmem:[#allocation7 + $0x18] sm:$0xf]
    %v139 = vld [vmem:[#allocation7 + $0x1c] sm:$0xf]
    %v140 = vld [vmem:[#allocation7 + $0x20] sm:$0xf]
    %v141 = vld [vmem:[#allocation7 + $0x24] sm:$0xf]
    %v142 = vld [vmem:[#allocation7 + $0x28] sm:$0xf]
    %v143 = vld [vmem:[#allocation7 + $0x2c] sm:$0xf]
    %v144 = vld [vmem:[#allocation7 + $0x30] sm:$0xf]
    %v145 = vld [vmem:[#allocation7 + $0x34] sm:$0xf]
    %v146 = vld [vmem:[#allocation7 + $0x38] sm:$0xf]
    %v147 = vld [vmem:[#allocation7 + $0x3c] sm:$0xf]
    %v148 = vld [vmem:[#allocation5] sm:$0xf]
    %v149 = vld [vmem:[#allocation8] sm:$0xf]
    %v150 = vld [vmem:[#allocation8 + $0x4] sm:$0xf]
    %v151 = vld [vmem:[#allocation8 + $0x8] sm:$0xf]
    %v152 = vld [vmem:[#allocation8 + $0xc] sm:$0xf]
    %v153 = vld [vmem:[#allocation8 + $0x10] sm:$0xf]
    %v154 = vld [vmem:[#allocation8 + $0x14] sm:$0xf]
    %v155 = vld [vmem:[#allocation8 + $0x18] sm:$0xf]
    %v156 = vld [vmem:[#allocation8 + $0x1c] sm:$0xf]
    %v157 = vld [vmem:[#allocation8 + $0x20] sm:$0xf]
    %v158 = vld [vmem:[#allocation8 + $0x24] sm:$0xf]
    %v159 = vld [vmem:[#allocation8 + $0x28] sm:$0xf]
    %v160 = vld [vmem:[#allocation8 + $0x2c] sm:$0xf]
    %v161 = vld [vmem:[#allocation8 + $0x30] sm:$0xf]
    %v162 = vld [vmem:[#allocation8 + $0x34] sm:$0xf]
    %v163 = vld [vmem:[#allocation8 + $0x38] sm:$0xf]
    %v164 = vld [vmem:[#allocation8 + $0x3c] sm:$0xf]
    %v181 = vunpack.c.l.b16 %v149
    %v182 = vunpack.c.l.b16 %v150
    %v183 = vunpack.c.l.b16 %v151
    %v184 = vunpack.c.l.b16 %v152
    %v185 = vunpack.c.l.b16 %v153
    %v186 = vunpack.c.l.b16 %v154
    %v187 = vunpack.c.l.b16 %v155
    %v188 = vunpack.c.l.b16 %v156
    %v189 = vunpack.c.l.b16 %v157
    %v190 = vunpack.c.l.b16 %v158
    %v191 = vunpack.c.l.b16 %v159
    %v192 = vunpack.c.l.b16 %v160
    %v193 = vunpack.c.l.b16 %v161
    %v194 = vunpack.c.l.b16 %v162
    %v195 = vunpack.c.l.b16 %v163
    %v196 = vunpack.c.l.b16 %v164
    %v197 = vpack.c.b16 %v182, %v181
    %v198 = vpack.c.b16 %v184, %v183
    %v199 = vpack.c.b16 %v186, %v185
    %v200 = vpack.c.b16 %v188, %v187
    %v201 = vpack.c.b16 %v190, %v189
    %v202 = vpack.c.b16 %v192, %v191
    %v203 = vpack.c.b16 %v194, %v193
    %v204 = vpack.c.b16 %v196, %v195
    %213 = vmatprep.subr.bf16.mxu0 0
    %214 = vmatpush1.bf16.msra.mxu0 %v204
    %215 = vmatprep.subr.bf16.mxu0 0
    %216 = vmatpush1.bf16.msra.mxu0 %v203
    %217 = vmatprep.subr.bf16.mxu0 0
    %218 = vmatpush1.bf16.msra.mxu0 %v202
    %219 = vmatprep.subr.bf16.mxu0 0
    %220 = vmatpush1.bf16.msra.mxu0 %v201
    %221 = vmatprep.subr.bf16.mxu0 0
    %222 = vmatpush1.bf16.msra.mxu0 %v200
    %223 = vmatprep.subr.bf16.mxu0 0
    %224 = vmatpush1.bf16.msra.mxu0 %v199
    %225 = vmatprep.subr.bf16.mxu0 0
    %226 = vmatpush1.bf16.msra.mxu0 %v198
    %227 = vmatprep.subr.bf16.mxu0 0
    %228 = vmatpush1.bf16.msra.mxu0 %v197
    %229 = vmatprep.subr.bf16.mxu0 0
    %230 = vmatpush2.bf16.msra.mxu0 0
    %231 = vmatprep.subr.bf16.mxu0 0
    %232 = vmatpush2.bf16.msra.mxu0 0
    %233 = vmatprep.subr.bf16.mxu0 0
    %234 = vmatpush2.bf16.msra.mxu0 0
    %235 = vmatprep.subr.bf16.mxu0 0
    %236 = vmatpush2.bf16.msra.mxu0 0
    %237 = vmatprep.subr.bf16.mxu0 0
    %238 = vmatpush2.bf16.msra.mxu0 0
    %239 = vmatprep.subr.bf16.mxu0 0
    %240 = vmatpush2.bf16.msra.mxu0 0
    %241 = vmatprep.subr.bf16.mxu0 0
    %242 = vmatpush2.bf16.msra.mxu0 0
    %243 = vmatprep.subr.bf16.mxu0 0
    %244 = vmatpush2.bf16.msra.mxu0 0
    %245 = vmatprep.mubr.bf16.mxu0 0
    %246 = vmatmul.mubr.bf16.gmra.mxu0 %v148
    %v247 = vpop.f32.mrf.mxu0
    %v248 = vadd.f32 0.0, %v247
    %v249 = vpop.f32.mrf.mxu0
    %v250 = vpop.f32.mrf.mxu0
    %v251 = vpop.f32.mrf.mxu0
    %252 = vdwg.mxu0
    %v269 = vunpack.c.l.b16 %v132
    %v270 = vunpack.c.l.b16 %v133
    %v271 = vunpack.c.l.b16 %v134
    %v272 = vunpack.c.l.b16 %v135
    %v273 = vunpack.c.l.b16 %v136
    %v274 = vunpack.c.l.b16 %v137
    %v275 = vunpack.c.l.b16 %v138
    %v276 = vunpack.c.l.b16 %v139
    %v277 = vunpack.c.l.b16 %v140
    %v278 = vunpack.c.l.b16 %v141
    %v279 = vunpack.c.l.b16 %v142
    %v280 = vunpack.c.l.b16 %v143
    %v281 = vunpack.c.l.b16 %v144
    %v282 = vunpack.c.l.b16 %v145
    %v283 = vunpack.c.l.b16 %v146
    %v284 = vunpack.c.l.b16 %v147
    %v285 = vpack.c.b16 %v270, %v269
    %v286 = vpack.c.b16 %v272, %v271
    %v287 = vpack.c.b16 %v274, %v273
    %v288 = vpack.c.b16 %v276, %v275
    %v289 = vpack.c.b16 %v278, %v277
    %v290 = vpack.c.b16 %v280, %v279
    %v291 = vpack.c.b16 %v282, %v281
    %v292 = vpack.c.b16 %v284, %v283
    %301 = vmatprep.subr.bf16.mxu0 0
    %302 = vmatpush1.bf16.msra.mxu0 %v292
    %303 = vmatprep.subr.bf16.mxu0 0
    %304 = vmatpush1.bf16.msra.mxu0 %v291
    %305 = vmatprep.subr.bf16.mxu0 0
    %306 = vmatpush1.bf16.msra.mxu0 %v290
    %307 = vmatprep.subr.bf16.mxu0 0
    %308 = vmatpush1.bf16.msra.mxu0 %v289
    %309 = vmatprep.subr.bf16.mxu0 0
    %310 = vmatpush1.bf16.msra.mxu0 %v288
    %311 = vmatprep.subr.bf16.mxu0 0
    %312 = vmatpush1.bf16.msra.mxu0 %v287
    %313 = vmatprep.subr.bf16.mxu0 0
    %314 = vmatpush1.bf16.msra.mxu0 %v286
    %315 = vmatprep.subr.bf16.mxu0 0
    %316 = vmatpush1.bf16.msra.mxu0 %v285
    %317 = vmatprep.subr.bf16.mxu0 0
    %318 = vmatpush2.bf16.msra.mxu0 0
    %319 = vmatprep.subr.bf16.mxu0 0
    %320 = vmatpush2.bf16.msra.mxu0 0
    %321 = vmatprep.subr.bf16.mxu0 0
    %322 = vmatpush2.bf16.msra.mxu0 0
    %323 = vmatprep.subr.bf16.mxu0 0
    %324 = vmatpush2.bf16.msra.mxu0 0
    %325 = vmatprep.subr.bf16.mxu0 0
    %326 = vmatpush2.bf16.msra.mxu0 0
    %327 = vmatprep.subr.bf16.mxu0 0
    %328 = vmatpush2.bf16.msra.mxu0 0
    %329 = vmatprep.subr.bf16.mxu0 0
    %330 = vmatpush2.bf16.msra.mxu0 0
    %331 = vmatprep.subr.bf16.mxu0 0
    %332 = vmatpush2.bf16.msra.mxu0 0
    %333 = vmatprep.mubr.bf16.mxu0 0
    %334 = vmatmul.mubr.bf16.gmra.mxu0 %v131
    %v335 = vpop.f32.mrf.mxu0
    %v336 = vadd.f32 %v248, %v335
    %v337 = vpop.f32.mrf.mxu0
    %v338 = vpop.f32.mrf.mxu0
    %v339 = vpop.f32.mrf.mxu0
    %340 = vdwg.mxu0
    %v341 = vld [vmem:[%s4] sm:$0x1]
    %v343 = vlaneseq
    %v344 = vshrl.u32 %v343, 7
    %v345 = vsub.s32 0, %v344
    %v346 = vrot.slane %v341, %v345
    %v348 = vadd.f32 %v336, %v346
    %v349 = vmax.f32 %v348, 0.0
    %v350 = vpack.c.bf16 %v349, %v349
    %v351 = vld [vmem:[#allocation10] sm:$0xf]
    %v352 = vld [vmem:[#allocation10 + $0x4] sm:$0xf]
    %v353 = vld [vmem:[#allocation10 + $0x8] sm:$0xf]
    %v354 = vld [vmem:[#allocation10 + $0xc] sm:$0xf]
    %v355 = vld [vmem:[#allocation10 + $0x10] sm:$0xf]
    %v356 = vld [vmem:[#allocation10 + $0x14] sm:$0xf]
    %v357 = vld [vmem:[#allocation10 + $0x18] sm:$0xf]
    %v358 = vld [vmem:[#allocation10 + $0x1c] sm:$0xf]
    %v359 = vld [vmem:[#allocation10 + $0x20] sm:$0xf]
    %v360 = vld [vmem:[#allocation10 + $0x24] sm:$0xf]
    %v361 = vld [vmem:[#allocation10 + $0x28] sm:$0xf]
    %v362 = vld [vmem:[#allocation10 + $0x2c] sm:$0xf]
    %v363 = vld [vmem:[#allocation10 + $0x30] sm:$0xf]
    %v364 = vld [vmem:[#allocation10 + $0x34] sm:$0xf]
    %v365 = vld [vmem:[#allocation10 + $0x38] sm:$0xf]
    %v366 = vld [vmem:[#allocation10 + $0x3c] sm:$0xf]
    %v367 = vld [vmem:[%s6] sm:$0x1]
    %v369 = vlaneseq
    %v370 = vshrl.u32 %v369, 7
    %v371 = vsub.s32 0, %v370
    %v372 = vrot.slane %v367, %v371
    %v390 = vunpack.c.l.b16 %v351
    %v391 = vunpack.c.l.b16 %v352
    %v392 = vunpack.c.l.b16 %v353
    %v393 = vunpack.c.l.b16 %v354
    %v394 = vunpack.c.l.b16 %v355
    %v395 = vunpack.c.l.b16 %v356
    %v396 = vunpack.c.l.b16 %v357
    %v397 = vunpack.c.l.b16 %v358
    %v398 = vunpack.c.l.b16 %v359
    %v399 = vunpack.c.l.b16 %v360
    %v400 = vunpack.c.l.b16 %v361
    %v401 = vunpack.c.l.b16 %v362
    %v402 = vunpack.c.l.b16 %v363
    %v403 = vunpack.c.l.b16 %v364
    %v404 = vunpack.c.l.b16 %v365
    %v405 = vunpack.c.l.b16 %v366
    %v406 = vpack.c.b16 %v391, %v390
    %v407 = vpack.c.b16 %v393, %v392
    %v408 = vpack.c.b16 %v395, %v394
    %v409 = vpack.c.b16 %v397, %v396
    %v410 = vpack.c.b16 %v399, %v398
    %v411 = vpack.c.b16 %v401, %v400
    %v412 = vpack.c.b16 %v403, %v402
    %v413 = vpack.c.b16 %v405, %v404
    %422 = vmatprep.subr.bf16.mxu0 0
    %423 = vmatpush1.bf16.msra.mxu0 %v413
    %424 = vmatprep.subr.bf16.mxu0 0
    %425 = vmatpush1.bf16.msra.mxu0 %v412
    %426 = vmatprep.subr.bf16.mxu0 0
    %427 = vmatpush1.bf16.msra.mxu0 %v411
    %428 = vmatprep.subr.bf16.mxu0 0
    %429 = vmatpush1.bf16.msra.mxu0 %v410
    %430 = vmatprep.subr.bf16.mxu0 0
    %431 = vmatpush1.bf16.msra.mxu0 %v409
    %432 = vmatprep.subr.bf16.mxu0 0
    %433 = vmatpush1.bf16.msra.mxu0 %v408
    %434 = vmatprep.subr.bf16.mxu0 0
    %435 = vmatpush1.bf16.msra.mxu0 %v407
    %436 = vmatprep.subr.bf16.mxu0 0
    %437 = vmatpush1.bf16.msra.mxu0 %v406
    %438 = vmatprep.subr.bf16.mxu0 0
    %439 = vmatpush2.bf16.msra.mxu0 0
    %440 = vmatprep.subr.bf16.mxu0 0
    %441 = vmatpush2.bf16.msra.mxu0 0
    %442 = vmatprep.subr.bf16.mxu0 0
    %443 = vmatpush2.bf16.msra.mxu0 0
    %444 = vmatprep.subr.bf16.mxu0 0
    %445 = vmatpush2.bf16.msra.mxu0 0
    %446 = vmatprep.subr.bf16.mxu0 0
    %447 = vmatpush2.bf16.msra.mxu0 0
    %448 = vmatprep.subr.bf16.mxu0 0
    %449 = vmatpush2.bf16.msra.mxu0 0
    %450 = vmatprep.subr.bf16.mxu0 0
    %451 = vmatpush2.bf16.msra.mxu0 0
    %452 = vmatprep.subr.bf16.mxu0 0
    %453 = vmatpush2.bf16.msra.mxu0 0
    %454 = vmatprep.mubr.bf16.mxu0 0
    %455 = vmatmul.mubr.bf16.gmra.mxu0 %v350
    %v456 = vpop.f32.mrf.mxu0
    %v457 = vadd.f32 %v372, %v456
    %v458 = vpop.f32.mrf.mxu0
    %v459 = vpop.f32.mrf.mxu0
    %v460 = vpop.f32.mrf.mxu0
    %461 = vdwg.mxu0
    %v462 = vmax.f32 %v457, 0.0
    %v463 = vpack.c.bf16 %v462, %v462
    %v464 = vld [vmem:[#allocation11] sm:$0xf]
    %v465 = vld [vmem:[#allocation11 + $0x4] sm:$0xf]
    %v466 = vld [vmem:[#allocation11 + $0x8] sm:$0xf]
    %v467 = vld [vmem:[#allocation11 + $0xc] sm:$0xf]
    %v468 = vld [vmem:[#allocation11 + $0x10] sm:$0xf]
    %v469 = vld [vmem:[#allocation11 + $0x14] sm:$0xf]
    %v470 = vld [vmem:[#allocation11 + $0x18] sm:$0xf]
    %v471 = vld [vmem:[#allocation11 + $0x1c] sm:$0xf]
    %v472 = vld [vmem:[#allocation11 + $0x20] sm:$0xf]
    %v473 = vld [vmem:[#allocation11 + $0x24] sm:$0xf]
    %v474 = vld [vmem:[#allocation11 + $0x28] sm:$0xf]
    %v475 = vld [vmem:[#allocation11 + $0x2c] sm:$0xf]
    %v476 = vld [vmem:[#allocation11 + $0x30] sm:$0xf]
    %v477 = vld [vmem:[#allocation11 + $0x34] sm:$0xf]
    %v478 = vld [vmem:[#allocation11 + $0x38] sm:$0xf]
    %v479 = vld [vmem:[#allocation11 + $0x3c] sm:$0xf]
    %v480 = vld [vmem:[%s8] sm:$0x1]
    %v482 = vlaneseq
    %v483 = vshrl.u32 %v482, 7
    %v484 = vsub.s32 0, %v483
    %v485 = vrot.slane %v480, %v484
    %v503 = vunpack.c.l.b16 %v464
    %v504 = vunpack.c.l.b16 %v465
    %v505 = vunpack.c.l.b16 %v466
    %v506 = vunpack.c.l.b16 %v467
    %v507 = vunpack.c.l.b16 %v468
    %v508 = vunpack.c.l.b16 %v469
    %v509 = vunpack.c.l.b16 %v470
    %v510 = vunpack.c.l.b16 %v471
    %v511 = vunpack.c.l.b16 %v472
    %v512 = vunpack.c.l.b16 %v473
    %v513 = vunpack.c.l.b16 %v474
    %v514 = vunpack.c.l.b16 %v475
    %v515 = vunpack.c.l.b16 %v476
    %v516 = vunpack.c.l.b16 %v477
    %v517 = vunpack.c.l.b16 %v478
    %v518 = vunpack.c.l.b16 %v479
    %v519 = vpack.c.b16 %v504, %v503
    %v520 = vpack.c.b16 %v506, %v505
    %v521 = vpack.c.b16 %v508, %v507
    %v522 = vpack.c.b16 %v510, %v509
    %v523 = vpack.c.b16 %v512, %v511
    %v524 = vpack.c.b16 %v514, %v513
    %v525 = vpack.c.b16 %v516, %v515
    %v526 = vpack.c.b16 %v518, %v517
    %535 = vmatprep.subr.bf16.mxu0 0
    %536 = vmatpush1.bf16.msra.mxu0 %v526
    %537 = vmatprep.subr.bf16.mxu0 0
    %538 = vmatpush1.bf16.msra.mxu0 %v525
    %539 = vmatprep.subr.bf16.mxu0 0
    %540 = vmatpush1.bf16.msra.mxu0 %v524
    %541 = vmatprep.subr.bf16.mxu0 0
    %542 = vmatpush1.bf16.msra.mxu0 %v523
    %543 = vmatprep.subr.bf16.mxu0 0
    %544 = vmatpush1.bf16.msra.mxu0 %v522
    %545 = vmatprep.subr.bf16.mxu0 0
    %546 = vmatpush1.bf16.msra.mxu0 %v521
    %547 = vmatprep.subr.bf16.mxu0 0
    %548 = vmatpush1.bf16.msra.mxu0 %v520
    %549 = vmatprep.subr.bf16.mxu0 0
    %550 = vmatpush1.bf16.msra.mxu0 %v519
    %551 = vmatprep.subr.bf16.mxu0 0
    %552 = vmatpush2.bf16.msra.mxu0 0
    %553 = vmatprep.subr.bf16.mxu0 0
    %554 = vmatpush2.bf16.msra.mxu0 0
    %555 = vmatprep.subr.bf16.mxu0 0
    %556 = vmatpush2.bf16.msra.mxu0 0
    %557 = vmatprep.subr.bf16.mxu0 0
    %558 = vmatpush2.bf16.msra.mxu0 0
    %559 = vmatprep.subr.bf16.mxu0 0
    %560 = vmatpush2.bf16.msra.mxu0 0
    %561 = vmatprep.subr.bf16.mxu0 0
    %562 = vmatpush2.bf16.msra.mxu0 0
    %563 = vmatprep.subr.bf16.mxu0 0
    %564 = vmatpush2.bf16.msra.mxu0 0
    %565 = vmatprep.subr.bf16.mxu0 0
    %566 = vmatpush2.bf16.msra.mxu0 0
    %567 = vmatprep.mubr.bf16.mxu0 0
    %568 = vmatmul.mubr.bf16.gmra.mxu0 %v463
    %v569 = vpop.f32.mrf.mxu0
    %v570 = vadd.f32 %v485, %v569
    %v571 = vpop.f32.mrf.mxu0
    %v572 = vpop.f32.mrf.mxu0
    %v573 = vpop.f32.mrf.mxu0
    %574 = vdwg.mxu0
    %v575 = vmax.f32 %v570, 0.0
    %v576 = vpack.c.bf16 %v575, %v575
    %v577 = vld [vmem:[#allocation13] sm:$0xf]
    %v578 = vld [vmem:[#allocation13 + $0x4] sm:$0xf]
    %v579 = vld [vmem:[#allocation13 + $0x8] sm:$0xf]
    %v580 = vld [vmem:[#allocation13 + $0xc] sm:$0xf]
    %v581 = vld [vmem:[#allocation13 + $0x10] sm:$0xf]
    %v582 = vld [vmem:[#allocation13 + $0x14] sm:$0xf]
    %v583 = vld [vmem:[#allocation13 + $0x18] sm:$0xf]
    %v584 = vld [vmem:[#allocation13 + $0x1c] sm:$0xf]
    %v585 = vld [vmem:[#allocation13 + $0x20] sm:$0xf]
    %v586 = vld [vmem:[#allocation13 + $0x24] sm:$0xf]
    %v587 = vld [vmem:[#allocation13 + $0x28] sm:$0xf]
    %v588 = vld [vmem:[#allocation13 + $0x2c] sm:$0xf]
    %v589 = vld [vmem:[#allocation13 + $0x30] sm:$0xf]
    %v590 = vld [vmem:[#allocation13 + $0x34] sm:$0xf]
    %v591 = vld [vmem:[#allocation13 + $0x38] sm:$0xf]
    %v592 = vld [vmem:[#allocation13 + $0x3c] sm:$0xf]
    %v593 = vld [vmem:[%s10] sm:$0x1]
    %v595 = vlaneseq
    %v596 = vshrl.u32 %v595, 7
    %v597 = vsub.s32 0, %v596
    %v598 = vrot.slane %v593, %v597
    %v616 = vunpack.c.l.b16 %v577
    %v617 = vunpack.c.l.b16 %v578
    %v618 = vunpack.c.l.b16 %v579
    %v619 = vunpack.c.l.b16 %v580
    %v620 = vunpack.c.l.b16 %v581
    %v621 = vunpack.c.l.b16 %v582
    %v622 = vunpack.c.l.b16 %v583
    %v623 = vunpack.c.l.b16 %v584
    %v624 = vunpack.c.l.b16 %v585
    %v625 = vunpack.c.l.b16 %v586
    %v626 = vunpack.c.l.b16 %v587
    %v627 = vunpack.c.l.b16 %v588
    %v628 = vunpack.c.l.b16 %v589
    %v629 = vunpack.c.l.b16 %v590
    %v630 = vunpack.c.l.b16 %v591
    %v631 = vunpack.c.l.b16 %v592
    %v632 = vpack.c.b16 %v617, %v616
    %v633 = vpack.c.b16 %v619, %v618
    %v634 = vpack.c.b16 %v621, %v620
    %v635 = vpack.c.b16 %v623, %v622
    %v636 = vpack.c.b16 %v625, %v624
    %v637 = vpack.c.b16 %v627, %v626
    %v638 = vpack.c.b16 %v629, %v628
    %v639 = vpack.c.b16 %v631, %v630
    %648 = vmatprep.subr.bf16.mxu0 0
    %649 = vmatpush1.bf16.msra.mxu0 %v639
    %650 = vmatprep.subr.bf16.mxu0 0
    %651 = vmatpush1.bf16.msra.mxu0 %v638
    %652 = vmatprep.subr.bf16.mxu0 0
    %653 = vmatpush1.bf16.msra.mxu0 %v637
    %654 = vmatprep.subr.bf16.mxu0 0
    %655 = vmatpush1.bf16.msra.mxu0 %v636
    %656 = vmatprep.subr.bf16.mxu0 0
    %657 = vmatpush1.bf16.msra.mxu0 %v635
    %658 = vmatprep.subr.bf16.mxu0 0
    %659 = vmatpush1.bf16.msra.mxu0 %v634
    %660 = vmatprep.subr.bf16.mxu0 0
    %661 = vmatpush1.bf16.msra.mxu0 %v633
    %662 = vmatprep.subr.bf16.mxu0 0
    %663 = vmatpush1.bf16.msra.mxu0 %v632
    %664 = vmatprep.subr.bf16.mxu0 0
    %665 = vmatpush2.bf16.msra.mxu0 0
    %666 = vmatprep.subr.bf16.mxu0 0
    %667 = vmatpush2.bf16.msra.mxu0 0
    %668 = vmatprep.subr.bf16.mxu0 0
    %669 = vmatpush2.bf16.msra.mxu0 0
    %670 = vmatprep.subr.bf16.mxu0 0
    %671 = vmatpush2.bf16.msra.mxu0 0
    %672 = vmatprep.subr.bf16.mxu0 0
    %673 = vmatpush2.bf16.msra.mxu0 0
    %674 = vmatprep.subr.bf16.mxu0 0
    %675 = vmatpush2.bf16.msra.mxu0 0
    %676 = vmatprep.subr.bf16.mxu0 0
    %677 = vmatpush2.bf16.msra.mxu0 0
    %678 = vmatprep.subr.bf16.mxu0 0
    %679 = vmatpush2.bf16.msra.mxu0 0
    %680 = vmatprep.mubr.bf16.mxu0 0
    %681 = vmatmul.mubr.bf16.gmra.mxu0 %v576
    %v682 = vpop.f32.mrf.mxu0
    %v683 = vadd.f32 %v598, %v682
    %v684 = vpop.f32.mrf.mxu0
    %v685 = vpop.f32.mrf.mxu0
    %v686 = vpop.f32.mrf.mxu0
    %687 = vdwg.mxu0
    %v688 = vmax.f32 %v683, 0.0
    %v689 = vmin.f32 %v688, 1.0
    %690 = vst [vmem:[#allocation14] sm:$0xff] %v689
    // Predicated region
    $region74: #{tpu_custom_call.1} parent=1 // pred_check
      _
    $region75: #{tpu_custom_call.1} parent=1 // pred_check_branch
      %692 = sbr.rel (0) target = $region77
    $region76: #{tpu_custom_call.1} parent=1 // pred_region
      %s694 = ssub.s32 128, 128
      %695 = vsyncadd [#allocation4], %s694
      %s697 = sshll.u32 [#allocation14], 4
      %s698 = int_to_ptr.vmem [resolvable:$true] %s697
      %700 = dma.vmem_to_hbm [thread:$0]  %s698, 128, %s11, [#allocation4]
    $region77: #{tpu_custom_call.1} parent=1 // pred_fallthru
      _
    // Predicated region
    $region78: #{tpu_custom_call.1} parent=1 // pred_check
      _
    $region79: #{tpu_custom_call.1} parent=1 // pred_check_branch
      %702 = sbr.rel (0) target = $region81
    $region80: #{tpu_custom_call.1} parent=1 // pred_region
      %703 = dma.done [#allocation4], 128
    $region81: #{tpu_custom_call.1} parent=1 // pred_fallthru
      _
    %704 = vsyncpa [#allocation3], 1
    %705 = vsyncpa [#allocation6], 1
    %706 = vsyncpa [#allocation9], 1
    %707 = vsyncpa [#allocation12], 1
    %708 = vsyncpa [#allocation4], 1

</llo_original>
